<compile_context>
chip_gen: v7x
topology: tpu7x:2x2x1
jax: 0.10.0
libtpu: 0.0.40
codegen_flags: <defaults>
</compile_context>

<pallas_src>
import functools

import jax
import jax.numpy as jnp
from jax import lax
from jax.experimental import pallas as pl
from jax.experimental.pallas import tpu as pltpu

# ----------------------------- configuration --------------------------------
N_MODELS = 3               # number of parallel models being summed
C = 4                      # data channels
HID = 32                   # hidden channels of each model
MHID = N_MODELS * HID      # fused hidden width (96)
MAX_TP = 2048              # max pixels per grid step (HBM-tile size)


def _round_up(x, m):
    return (x + m - 1) // m * m


# ------------------------------- kernel --------------------------------------
def parallel_sum_kernel(x_ref, w1_ref, b1_ref, w2_ref, b2_ref, o_ref, *, sub, n_sub):
    """Fused sum-of-models 2-layer net for one (batch, pixel-tile) block.

    x_ref  : (1, C, TP)      input pixels, channel-major / pixel-on-lanes (f32)
    w1_ref : (MHID, C)       fused first-layer weights (bf16, resident in VMEM)
    b1_ref : (MHID, 1)       fused first-layer effective bias (t folded in, f32)
    w2_ref : (C, MHID)       fused second-layer weights (bf16)
    b2_ref : (C, 1)          summed second-layer effective bias (f32)
    o_ref  : (1, C, TP)      summed output (f32)
    """
    w1 = w1_ref[...]                                        # (MHID, C)  bf16
    w2 = w2_ref[...]                                        # (C, MHID)  bf16
    # Hoist bias broadcasts out of the sub-chunk loop (broadcast_in_dim is not CSE'd).
    b1 = jnp.broadcast_to(b1_ref[...], (MHID, sub))         # (MHID, sub) f32
    b2 = jnp.broadcast_to(b2_ref[...], (C, sub))            # (C,   sub) f32

    def body(s, carry):
        off = pl.multiple_of(s * sub, sub)
        x = x_ref[0, :, pl.ds(off, sub)].astype(jnp.bfloat16)          # (C, sub)
        # layer 1: (MHID, C) @ (C, sub) -> f32 accum
        h = jnp.dot(w1, x, preferred_element_type=jnp.float32) + b1    # (MHID, sub)
        h = jax.nn.softplus(h)                                         # f32 (v5e-safe)
        # layer 2: (C, MHID) @ (MHID, sub); K-reduction = sum over models
        o = jnp.dot(w2, h.astype(jnp.bfloat16),
                    preferred_element_type=jnp.float32) + b2           # (C, sub)
        o_ref[0, :, pl.ds(off, sub)] = o.astype(o_ref.dtype)
        return carry

    lax.fori_loop(0, n_sub, body, 0, unroll=True)


# ------------------------------- wrapper --------------------------------------
def parallel_sum_models(t, y_nchw, params):
    """Apply sum_m model_m(t, y); models are 2-layer 1x1 ConcatConv nets.

    t       : scalar time
    y_nchw  : (N, C, H, W) float32 (PyTorch NCHW layout)
    params  : W1 (M, HID, C+1), b1 (M, HID), W2 (M, C, HID+1), b2 (M, C)
              (channel 0 of the "+1" axis is the time channel, as in ConcatConv2d)
    """
    N, Cin, H, W = y_nchw.shape
    assert Cin == C

    # ---- glue: fold t into effective biases, fuse models into two matmuls ----
    W1, b1, W2, b2 = params["W1"], params["b1"], params["W2"], params["b2"]
    t = jnp.asarray(t, jnp.float32)
    # Layer 1: rows ordered model-major / hidden-minor.
    w1_cat = W1[:, :, 1:].reshape(MHID, C).astype(jnp.bfloat16)         # (96, 4)
    b1_cat = (b1 + t * W1[:, :, 0]).reshape(MHID, 1)                    # (96, 1) f32
    # Layer 2: concatenate along the contraction axis; its K-reduction sums models.
    w2_cat = jnp.transpose(W2[:, :, 1:], (1, 0, 2)).reshape(C, MHID)    # (4, 96)
    w2_cat = w2_cat.astype(jnp.bfloat16)
    b2_sum = jnp.sum(b2 + t * W2[:, :, 0], axis=0).reshape(C, 1)        # (4, 1) f32

    # ---- glue: NCHW -> (N, C, H*W) is a free reshape (no transpose) ----
    x = y_nchw.astype(jnp.float32).reshape(N, C, H * W)
    p_hw = H * W
    tp = min(MAX_TP, _round_up(p_hw, 128))           # lane-aligned pixel tile
    p_pad = _round_up(p_hw, tp)
    if p_pad != p_hw:
        x = jnp.pad(x, ((0, 0), (0, 0), (0, p_pad - p_hw)))
    sub = 256 if tp % 256 == 0 else 128              # in-kernel sub-chunk
    n_sub = tp // sub

    out = pl.pallas_call(
        functools.partial(parallel_sum_kernel, sub=sub, n_sub=n_sub),
        out_shape=jax.ShapeDtypeStruct((N, C, p_pad), jnp.float32),
        grid_spec=pltpu.PrefetchScalarGridSpec(
            num_scalar_prefetch=0,
            grid=(N, p_pad // tp),
            in_specs=[
                pl.BlockSpec((1, C, tp), lambda n, i: (n, 0, i)),
                pl.BlockSpec(memory_space=pltpu.MemorySpace.VMEM),   # w1_cat
                pl.BlockSpec(memory_space=pltpu.MemorySpace.VMEM),   # b1_cat
                pl.BlockSpec(memory_space=pltpu.MemorySpace.VMEM),   # w2_cat
                pl.BlockSpec(memory_space=pltpu.MemorySpace.VMEM),   # b2_sum
            ],
            out_specs=pl.BlockSpec((1, C, tp), lambda n, i: (n, 0, i)),
        ),
        compiler_params=pltpu.CompilerParams(
            dimension_semantics=("parallel", "parallel")),
    )(x, w1_cat, b1_cat, w2_cat, b2_sum)

    # ---- glue: drop pixel padding, back to NCHW (free reshape) ----
    return out[:, :, :p_hw].reshape(N, C, H, W)


# ------------------------- pure-JAX f32 reference -----------------------------
def reference(t, y_nchw, params):
    W1, b1, W2, b2 = params["W1"], params["b1"], params["W2"], params["b2"]
    N, Cin, H, W = y_nchw.shape
    x = jnp.transpose(y_nchw, (0, 2, 3, 1)).reshape(-1, Cin)
    t = jnp.asarray(t, jnp.float32)
    tt = jnp.full((x.shape[0], 1), t, jnp.float32)
    out = jnp.zeros_like(x)
    for m in range(N_MODELS):
        xin = jnp.concatenate([tt, x], axis=1)                 # (P, C+1)
        h = jax.nn.softplus(xin @ W1[m].T + b1[m])             # (P, HID)
        hin = jnp.concatenate([tt, h], axis=1)                 # (P, HID+1)
        out = out + hin @ W2[m].T + b2[m]                      # (P, C)
    return jnp.transpose(out.reshape(N, H, W, Cin), (0, 3, 1, 2))


# --------------------------------- main ---------------------------------------
if __name__ == "__main__":
    key = jax.random.PRNGKey(0)
    k_y, k_w1, k_b1, k_w2, k_b2 = jax.random.split(key, 5)

    batch, spatial = 2, 16
    y = jax.random.normal(k_y, (batch, C, spatial, spatial), jnp.float32)
    t = 0.5

    params = {
        "W1": 0.1 * jax.random.normal(k_w1, (N_MODELS, HID, C + 1), jnp.float32),
        "b1": 0.1 * jax.random.normal(k_b1, (N_MODELS, HID), jnp.float32),
        "W2": 0.1 * jax.random.normal(k_w2, (N_MODELS, C, HID + 1), jnp.float32),
        "b2": 0.1 * jax.random.normal(k_b2, (N_MODELS, C), jnp.float32),
    }

    out = parallel_sum_models(t, y, params)
    out = jax.block_until_ready(out)

    ref = reference(t, y, params)
    assert out.shape == y.shape
    # Tolerance sized for bf16 matmul operands with f32 accumulation (the
    # reference is full f32); observed error is O(1e-3) on O(1) outputs.
    assert jnp.allclose(out, ref, atol=2e-2, rtol=2e-2), "mismatch vs reference"

    print("KERNEL_OK")
</pallas_src>

<mosaic_0001>
module attributes {stable_mosaic.version = 11 : i64} {
  func.func @parallel_sum_kernel(%arg0: i32, %arg1: i32, %arg2: memref<1x4x256xf32, #tpu.memory_space<vmem>>, %arg3: memref<96x4xbf16, #tpu.memory_space<vmem>>, %arg4: memref<96x1xf32, #tpu.memory_space<vmem>>, %arg5: memref<4x96xbf16, #tpu.memory_space<vmem>>, %arg6: memref<4x1xf32, #tpu.memory_space<vmem>>, %arg7: memref<1x4x256xf32, #tpu.memory_space<vmem>>) attributes {dimension_semantics = [#tpu.dimension_semantics<parallel>, #tpu.dimension_semantics<parallel>], iteration_bounds = array<i64: 2, 1>, scalar_prefetch = 0 : i64, scratch_operands = 0 : i64, tpu.core_type = #tpu.core_type<tc>, window_params = [{transform_indices = @transform_0, window_bounds = array<i64: 1, 4, 256>}, {pipeline_mode = #tpu.pipeline_mode<synchronous>, transform_indices = @transform_1, window_bounds = array<i64: 96, 4>}, {pipeline_mode = #tpu.pipeline_mode<synchronous>, transform_indices = @transform_2, window_bounds = array<i64: 96, 1>}, {pipeline_mode = #tpu.pipeline_mode<synchronous>, transform_indices = @transform_3, window_bounds = array<i64: 4, 96>}, {pipeline_mode = #tpu.pipeline_mode<synchronous>, transform_indices = @transform_4, window_bounds = array<i64: 4, 1>}, {transform_indices = @transform_5, window_bounds = array<i64: 1, 4, 256>}]} {
    %c0 = arith.constant 0 : index
    %c0_0 = arith.constant 0 : index
    %0 = vector.load %arg3[%c0, %c0_0] : memref<96x4xbf16, #tpu.memory_space<vmem>>, vector<96x4xbf16>
    %c0_1 = arith.constant 0 : index
    %c0_2 = arith.constant 0 : index
    %1 = vector.load %arg5[%c0_1, %c0_2] : memref<4x96xbf16, #tpu.memory_space<vmem>>, vector<4x96xbf16>
    %c0_3 = arith.constant 0 : index
    %c0_4 = arith.constant 0 : index
    %2 = vector.load %arg4[%c0_3, %c0_4] : memref<96x1xf32, #tpu.memory_space<vmem>>, vector<96x1xf32>
    %3 = vector.shape_cast %2 : vector<96x1xf32> to vector<96x1xf32>
    %4 = vector.broadcast %3 : vector<96x1xf32> to vector<96x256xf32>
    %c0_5 = arith.constant 0 : index
    %c0_6 = arith.constant 0 : index
    %5 = vector.load %arg6[%c0_5, %c0_6] : memref<4x1xf32, #tpu.memory_space<vmem>>, vector<4x1xf32>
    %6 = vector.shape_cast %5 : vector<4x1xf32> to vector<4x1xf32>
    %7 = vector.broadcast %6 : vector<4x1xf32> to vector<4x256xf32>
    %c0_i32 = arith.constant 0 : i32
    %c256_i32 = arith.constant 256 : i32
    %8 = arith.muli %c0_i32, %c256_i32 : i32
    %9 = tpu.assume_multiple %8, 256 : i32
    %c0_7 = arith.constant 0 : index
    %c0_8 = arith.constant 0 : index
    %10 = arith.index_cast %9 : i32 to index
    %11 = vector.load %arg2[%c0_7, %c0_8, %10] : memref<1x4x256xf32, #tpu.memory_space<vmem>>, vector<1x4x256xf32>
    %12 = vector.shape_cast %11 : vector<1x4x256xf32> to vector<4x256xf32>
    %13 = arith.truncf %12 : vector<4x256xf32> to vector<4x256xbf16>
    %cst = arith.constant dense<0.000000e+00> : vector<96x256xf32>
    %14 = tpu.matmul %0, %13, %cst {dimension_numbers = #tpu.dot_dimension_numbers<[1], [0], [0], [1], [0, 0, 1, 1], [], []>} : vector<96x4xbf16>, vector<4x256xbf16>, vector<96x256xf32> -> vector<96x256xf32>
    %15 = arith.addf %14, %4 : vector<96x256xf32>
    %cst_9 = arith.constant 0.000000e+00 : f32
    %16 = vector.broadcast %cst_9 : f32 to vector<96x256xf32>
    %17 = arith.maximumf %15, %16 : vector<96x256xf32>
    %18 = vector.broadcast %cst_9 : f32 to vector<96x256xf32>
    %19 = arith.subf %15, %18 : vector<96x256xf32>
    %20 = arith.cmpf one, %19, %19 : vector<96x256xf32>
    %21 = vector.broadcast %cst_9 : f32 to vector<96x256xf32>
    %22 = arith.addf %15, %21 : vector<96x256xf32>
    %23 = math.absf %19 : vector<96x256xf32>
    %cst_10 = arith.constant 0.000000e+00 : f32
    %24 = vector.broadcast %cst_10 : f32 to vector<96x256xf32>
    %25 = arith.subf %24, %23 : vector<96x256xf32>
    %26 = math.exp %25 : vector<96x256xf32>
    %27 = math.log1p %26 : vector<96x256xf32>
    %28 = arith.addf %17, %27 : vector<96x256xf32>
    %29 = arith.select %20, %22, %28 : vector<96x256xi1>, vector<96x256xf32>
    %30 = arith.truncf %29 : vector<96x256xf32> to vector<96x256xbf16>
    %cst_11 = arith.constant dense<0.000000e+00> : vector<4x256xf32>
    %31 = tpu.matmul %1, %30, %cst_11 {dimension_numbers = #tpu.dot_dimension_numbers<[1], [0], [0], [1], [0, 0, 1, 1], [], []>} : vector<4x96xbf16>, vector<96x256xbf16>, vector<4x256xf32> -> vector<4x256xf32>
    %32 = arith.addf %31, %7 : vector<4x256xf32>
    %c0_12 = arith.constant 0 : index
    %c0_13 = arith.constant 0 : index
    %33 = arith.index_cast %9 : i32 to index
    %34 = vector.load %arg7[%c0_12, %c0_13, %33] : memref<1x4x256xf32, #tpu.memory_space<vmem>>, vector<1x4x256xf32>
    %35 = vector.shape_cast %34 : vector<1x4x256xf32> to vector<4x256xf32>
    %36 = vector.shape_cast %32 : vector<4x256xf32> to vector<1x4x256xf32>
    tpu.vector_store %arg7[%c0_12, %c0_13, %33], %36 {strides = array<i32>} : memref<1x4x256xf32, #tpu.memory_space<vmem>>, vector<1x4x256xf32>,
    %c1_i32 = arith.constant 1 : i32
    return
  }
  func.func @transform_0(%arg0: i32, %arg1: i32) -> (i32, i32, i32) {
    %c0_i32 = arith.constant 0 : i32
    %c0_i32_0 = arith.constant 0 : i32
    return %arg0, %c0_i32, %arg1 : i32, i32, i32
  }
  func.func @transform_1(%arg0: i32, %arg1: i32) -> (i32, i32) {
    %c0_i32 = arith.constant 0 : i32
    %c0_i32_0 = arith.constant 0 : i32
    %c0_i32_1 = arith.constant 0 : i32
    return %c0_i32, %c0_i32_0 : i32, i32
  }
  func.func @transform_2(%arg0: i32, %arg1: i32) -> (i32, i32) {
    %c0_i32 = arith.constant 0 : i32
    %c0_i32_0 = arith.constant 0 : i32
    %c0_i32_1 = arith.constant 0 : i32
    return %c0_i32, %c0_i32_0 : i32, i32
  }
  func.func @transform_3(%arg0: i32, %arg1: i32) -> (i32, i32) {
    %c0_i32 = arith.constant 0 : i32
    %c0_i32_0 = arith.constant 0 : i32
    %c0_i32_1 = arith.constant 0 : i32
    return %c0_i32, %c0_i32_0 : i32, i32
  }
  func.func @transform_4(%arg0: i32, %arg1: i32) -> (i32, i32) {
    %c0_i32 = arith.constant 0 : i32
    %c0_i32_0 = arith.constant 0 : i32
    %c0_i32_1 = arith.constant 0 : i32
    return %c0_i32, %c0_i32_0 : i32, i32
  }
  func.func @transform_5(%arg0: i32, %arg1: i32) -> (i32, i32, i32) {
    %c0_i32 = arith.constant 0 : i32
    %c0_i32_0 = arith.constant 0 : i32
    return %arg0, %c0_i32, %arg1 : i32, i32, i32
  }
}

</mosaic_0001>

<llo_original>
// kernel: tpu_custom_call.1
$region0: #{tpu_custom_call.1}
  #allocation0 [shape = 'u32[]', space=smem, size = 0x4, offset = 0x4, fixed_abs, tag = 'smem constant byte address 0x4 - core index']
  #allocation1 [shape = 'u32[144,128]{1,0:T(1,128)}', space=vmem, size = 0x12000, scoped, tag = 'internal scratch']
  %s0 = inlined_call_operand.vmem [shape: f32[2,4,256], index: 0, kind: input, shape index: {}]
  %s1 = inlined_call_operand.vmem [shape: bf16[96,4], index: 1, kind: input, shape index: {}]
  %s2 = inlined_call_operand.vmem [shape: f32[96,1], index: 2, kind: input, shape index: {}]
  %s3 = inlined_call_operand.vmem [shape: bf16[4,96], index: 3, kind: input, shape index: {}]
  %s4 = inlined_call_operand.vmem [shape: f32[4,1], index: 4, kind: input, shape index: {}]
  %s5 = inlined_call_operand.hbm [shape: f32[2,4,256], index: 5, kind: output, shape index: {}]
  %s6 = sld [smem:[#allocation0]]
  $region53: #{tpu_custom_call.1} parent=0
    _
  %s8 = ssub.s32 1, %s6
  %s9 = scalar_select 0, %s8, %s6
  $region1: #{tpu_custom_call.1} parent=0
    #allocation2 [shape = 'u8[8192]{0}', space=vmem, size = 0x2000, scoped, tag = 'output window, operand 0']
    #allocation3 [shape = 's32[2]{0}', space=sflag, size = 0x8, scoped, tag = 'scoped memory for tpu_custom_call.1']
    %10 = vsyncpa [#allocation3], 0
    %s11 = scalar_lea.sflag [#allocation3], 1
    %12 = vsyncpa %s11, 0
    loop: start=0, step=1, limit=4
    $region2: #{tpu_custom_call.1} parent=1 // loop_pre_header
      _
    $region3: #{tpu_custom_call.1} parent=1 // loop_header
      %s14 = sphi 0, %s18
      %p15 = scmp.ge.s32.totalorder %s14, 4
      %s21 = sphi 0, %s33
      %s22 = sphi 0, %s29
      %s23 = sphi 0, %s21
      %s24 = sphi 0, %s22
      %s25 = sphi 0, %s23
      %s26 = sphi 0, %s24
      %s38 = sphi 0, %s40
      %s41 = sphi 0, %s38
      %s42 = sphi 0, %s41
      %s58 = sphi 0, %s42
      %s62 = sphi 0, %s62
      %s64 = sphi 0, %s62
      %s65 = sphi 0, %s64
      %s79 = sphi 0, %s65
      %s83 = sphi 0, %s83
      %s85 = sphi 0, %s83
      %s86 = sphi 0, %s85
      %s100 = sphi 0, %s86
      %s104 = sphi 0, %s104
      %s106 = sphi 0, %s104
      %s107 = sphi 0, %s106
      %s121 = sphi 0, %s107
      %s125 = sphi 0, %s125
      %s127 = sphi 0, %s125
      %s128 = sphi 0, %s127
      %s142 = sphi 0, %s128
      %s150 = sphi 0, %s152
      %s153 = sphi 0, %s150
      %s154 = sphi 0, %s153
      %s170 = sphi 0, %s154
    $region4: #{tpu_custom_call.1} parent=1 // loop_header_branch
      %17 = sbr.rel (%p15) target = $region8
    $region5: #{tpu_custom_call.1} parent=1 // loop_body
      %s19 = ssub.s32 %s14, 1
      %s20 = ssub.s32 %s14, 2
      %s27 = sadd.s32 1, %s22
      %p28 = scmp.ge.s32.totalorder %s27, 1
      %s29 = scalar_select %p28, 0, %s27
      %s30 = sadd.s32 1, %s21
      %s31 = scalar_select %p28, %s30, %s21
      %p32 = scmp.ge.s32.totalorder %s31, 2
      %s33 = scalar_select %p32, 0, %s31
      %s34 = ssub.s32 %s21, %s33
      %s35 = ssub.s32 %s22, %s29
      %s36 = sor.u32 %s34, %s35
      %p37 = scmp.eq.s32.totalorder %s36, 0
      %s39 = sadd.s32 %s38, 1
      %s40 = scalar_select %p37, %s38, %s39
      %p43 = pneg %p37
      %p44 = scmp.eq.s32.totalorder %s14, 1
      %p45 = por %p43, %p44
      %p46 = scmp.ne.s32.totalorder %s38, %s41
      %p47 = scmp.eq.s32.totalorder %s14, 0
      %p48 = por %p46, %p47
      %p49 = scmp.ne.s32.totalorder %s38, %s41
      %p50 = scmp.eq.s32.totalorder %s19, 1
      %p51 = por %p49, %p50
      %p52 = scmp.ne.s32.totalorder %s41, %s42
      %p53 = scmp.eq.s32.totalorder %s19, 0
      %p54 = por %p52, %p53
      %p55 = scmp.ne.s32.totalorder %s41, %s42
      %p56 = scmp.eq.s32.totalorder %s20, 1
      %p57 = por %p55, %p56
      %p59 = scmp.ne.s32.totalorder %s42, %s58
      %p60 = scmp.eq.s32.totalorder %s20, 0
      %p61 = por %p59, %p60
      %s63 = sadd.s32 %s62, 1
      %p66 = scmp.eq.s32.totalorder %s14, 1
      %p67 = scmp.ne.s32.totalorder %s62, %s64
      %p68 = scmp.eq.s32.totalorder %s14, 0
      %p69 = por %p67, %p68
      %p70 = scmp.ne.s32.totalorder %s62, %s64
      %p71 = scmp.eq.s32.totalorder %s19, 1
      %p72 = por %p70, %p71
      %p73 = scmp.ne.s32.totalorder %s64, %s65
      %p74 = scmp.eq.s32.totalorder %s19, 0
      %p75 = por %p73, %p74
      %p76 = scmp.ne.s32.totalorder %s64, %s65
      %p77 = scmp.eq.s32.totalorder %s20, 1
      %p78 = por %p76, %p77
      %p80 = scmp.ne.s32.totalorder %s65, %s79
      %p81 = scmp.eq.s32.totalorder %s20, 0
      %p82 = por %p80, %p81
      %s84 = sadd.s32 %s83, 1
      %p87 = scmp.eq.s32.totalorder %s14, 1
      %p88 = scmp.ne.s32.totalorder %s83, %s85
      %p89 = scmp.eq.s32.totalorder %s14, 0
      %p90 = por %p88, %p89
      %p91 = scmp.ne.s32.totalorder %s83, %s85
      %p92 = scmp.eq.s32.totalorder %s19, 1
      %p93 = por %p91, %p92
      %p94 = scmp.ne.s32.totalorder %s85, %s86
      %p95 = scmp.eq.s32.totalorder %s19, 0
      %p96 = por %p94, %p95
      %p97 = scmp.ne.s32.totalorder %s85, %s86
      %p98 = scmp.eq.s32.totalorder %s20, 1
      %p99 = por %p97, %p98
      %p101 = scmp.ne.s32.totalorder %s86, %s100
      %p102 = scmp.eq.s32.totalorder %s20, 0
      %p103 = por %p101, %p102
      %s105 = sadd.s32 %s104, 1
      %p108 = scmp.eq.s32.totalorder %s14, 1
      %p109 = scmp.ne.s32.totalorder %s104, %s106
      %p110 = scmp.eq.s32.totalorder %s14, 0
      %p111 = por %p109, %p110
      %p112 = scmp.ne.s32.totalorder %s104, %s106
      %p113 = scmp.eq.s32.totalorder %s19, 1
      %p114 = por %p112, %p113
      %p115 = scmp.ne.s32.totalorder %s106, %s107
      %p116 = scmp.eq.s32.totalorder %s19, 0
      %p117 = por %p115, %p116
      %p118 = scmp.ne.s32.totalorder %s106, %s107
      %p119 = scmp.eq.s32.totalorder %s20, 1
      %p120 = por %p118, %p119
      %p122 = scmp.ne.s32.totalorder %s107, %s121
      %p123 = scmp.eq.s32.totalorder %s20, 0
      %p124 = por %p122, %p123
      %s126 = sadd.s32 %s125, 1
      %p129 = scmp.eq.s32.totalorder %s14, 1
      %p130 = scmp.ne.s32.totalorder %s125, %s127
      %p131 = scmp.eq.s32.totalorder %s14, 0
      %p132 = por %p130, %p131
      %p133 = scmp.ne.s32.totalorder %s125, %s127
      %p134 = scmp.eq.s32.totalorder %s19, 1
      %p135 = por %p133, %p134
      %p136 = scmp.ne.s32.totalorder %s127, %s128
      %p137 = scmp.eq.s32.totalorder %s19, 0
      %p138 = por %p136, %p137
      %p139 = scmp.ne.s32.totalorder %s127, %s128
      %p140 = scmp.eq.s32.totalorder %s20, 1
      %p141 = por %p139, %p140
      %p143 = scmp.ne.s32.totalorder %s128, %s142
      %p144 = scmp.eq.s32.totalorder %s20, 0
      %p145 = por %p143, %p144
      %s146 = ssub.s32 %s21, %s33
      %s147 = ssub.s32 %s22, %s29
      %s148 = sor.u32 %s146, %s147
      %p149 = scmp.eq.s32.totalorder %s148, 0
      %s151 = sadd.s32 %s150, 1
      %s152 = scalar_select %p149, %s150, %s151
      %p155 = pneg %p149
      %p156 = scmp.eq.s32.totalorder %s14, 1
      %p157 = por %p155, %p156
      %p158 = scmp.ne.s32.totalorder %s150, %s153
      %p159 = scmp.eq.s32.totalorder %s14, 0
      %p160 = por %p158, %p159
      %p161 = scmp.ne.s32.totalorder %s150, %s153
      %p162 = scmp.eq.s32.totalorder %s19, 1
      %p163 = por %p161, %p162
      %p164 = scmp.ne.s32.totalorder %s153, %s154
      %p165 = scmp.eq.s32.totalorder %s19, 0
      %p166 = por %p164, %p165
      %p167 = scmp.ne.s32.totalorder %s153, %s154
      %p168 = scmp.eq.s32.totalorder %s20, 1
      %p169 = por %p167, %p168
      %p171 = scmp.ne.s32.totalorder %s154, %s170
      %p172 = scmp.eq.s32.totalorder %s20, 0
      %p173 = por %p171, %p172
      %p174 = scmp.le.s32.totalorder 1, %s14
      %p175 = scmp.lt.s32.totalorder %s14, 3
      %p176 = pnand %p174, %p175
      %p177 = pneg %p176
      // Predicated region
      $region9: #{tpu_custom_call.1} parent=5 // pred_check
        _
      $region10: #{tpu_custom_call.1} parent=5 // pred_check_branch
        %179 = sbr.rel (%p176) target = $region12
      $region11: #{tpu_custom_call.1} parent=5 // pred_region
        %s180 = ssub.s32 %s14, 1
        // Predicated region
        $region13: #{tpu_custom_call.1} parent=11 // pred_check
          %p181 = pneg %p75
        $region14: #{tpu_custom_call.1} parent=11 // pred_check_branch
          %183 = sbr.rel (%p181) target = $region16
        $region15: #{tpu_custom_call.1} parent=11 // pred_region
          _
        $region16: #{tpu_custom_call.1} parent=11 // pred_fallthru
          _
        // Predicated region
        $region17: #{tpu_custom_call.1} parent=11 // pred_check
          %p184 = pneg %p96
        $region18: #{tpu_custom_call.1} parent=11 // pred_check_branch
          %186 = sbr.rel (%p184) target = $region20
        $region19: #{tpu_custom_call.1} parent=11 // pred_region
          _
        $region20: #{tpu_custom_call.1} parent=11 // pred_fallthru
          _
        // Predicated region
        $region21: #{tpu_custom_call.1} parent=11 // pred_check
          %p187 = pneg %p117
        $region22: #{tpu_custom_call.1} parent=11 // pred_check_branch
          %189 = sbr.rel (%p187) target = $region24
        $region23: #{tpu_custom_call.1} parent=11 // pred_region
          _
        $region24: #{tpu_custom_call.1} parent=11 // pred_fallthru
          _
        // Predicated region
        $region25: #{tpu_custom_call.1} parent=11 // pred_check
          %p190 = pneg %p138
        $region26: #{tpu_custom_call.1} parent=11 // pred_check_branch
          %192 = sbr.rel (%p190) target = $region28
        $region27: #{tpu_custom_call.1} parent=11 // pred_region
          _
        $region28: #{tpu_custom_call.1} parent=11 // pred_fallthru
          _
      $region12: #{tpu_custom_call.1} parent=5 // pred_fallthru
        _
      %p193 = scmp.lt.s32.totalorder %s14, 2
      // Predicated region
      $region29: #{tpu_custom_call.1} parent=5 // pred_check
        %p194 = pneg %p193
      $region30: #{tpu_custom_call.1} parent=5 // pred_check_branch
        %196 = sbr.rel (%p194) target = $region32
      $region31: #{tpu_custom_call.1} parent=5 // pred_region
        // Predicated region
        $region33: #{tpu_custom_call.1} parent=31 // pred_check
          %p197 = pneg %p48
        $region34: #{tpu_custom_call.1} parent=31 // pred_check_branch
          %199 = sbr.rel (%p197) target = $region36
        $region35: #{tpu_custom_call.1} parent=31 // pred_region
          %s200 = smul.u32 2, %s22
          %p201 = scmp.lt.s32.totalorder %s21, 1
          %s202 = scalar_select %p201, %s21, 1
          %p203 = scmp.lt.s32.totalorder %s200, 1
          %s204 = scalar_select %p203, %s200, 1
          %s205 = smul.addr %s202, 2
          %s206 = sadd.s32 %s204, %s205
          %s207 = smul.addr %s206, 4
          %s208 = scalar_lea.vmem %s0, %s207
          %s209 = smul.u32 2, %s22
        $region36: #{tpu_custom_call.1} parent=31 // pred_fallthru
          _
      $region32: #{tpu_custom_call.1} parent=5 // pred_fallthru
        _
      %p210 = scmp.le.s32.totalorder 1, %s14
      %p211 = scmp.lt.s32.totalorder %s14, 3
      %p212 = pnand %p210, %p211
      %p213 = pneg %p212
      // Predicated region
      $region37: #{tpu_custom_call.1} parent=5 // pred_check
        _
      $region38: #{tpu_custom_call.1} parent=5 // pred_check_branch
        %215 = sbr.rel (%p212) target = $region40
      $region39: #{tpu_custom_call.1} parent=5 // pred_region
        %s216 = ssub.s32 %s14, 1
        %s217 = smul.u32 2, %s24
        %p218 = scmp.lt.s32.totalorder %s23, 1
        %s219 = scalar_select %p218, %s23, 1
        %p220 = scmp.lt.s32.totalorder %s217, 1
        %s221 = scalar_select %p220, %s217, 1
        %s222 = smul.addr %s219, 2
        %s223 = sadd.s32 %s221, %s222
        %s224 = smul.addr %s223, 4
        %s225 = scalar_lea.vmem %s0, %s224
        %p226 = pneg %p54
        %p227 = pneg %p51
        %p228 = pneg %p75
        %p229 = pneg %p72
        %p230 = pneg %p96
        %p231 = pneg %p93
        %p232 = pneg %p117
        %p233 = pneg %p114
        %p234 = pneg %p138
        %p235 = pneg %p135
        %p236 = pneg %p166
        %p237 = pneg %p163
        %s238 = sand.u32 %s153, 1
        %s239 = scalar_lea.sflag [#allocation3], %s238
        %s240 = sand.u32 %s153, 1
        %s241 = smul.addr %s240, 8
        %s242 = scalar_lea.vmem [#allocation2], %s241
        %s243 = smul.u32 2, %s24
        %p244 = scmp.lt.s32.totalorder %s23, 1
        %s245 = scalar_select %p244, %s23, 1
        %p246 = scmp.lt.s32.totalorder %s243, 1
        %s247 = scalar_select %p246, %s243, 1
        %s248 = smul.addr %s245, 2
        %s249 = sadd.s32 %s247, %s248
        %s250 = smul.addr %s249, 4
        %s251 = scalar_lea.vmem %s0, %s250
        %s252 = smul.u32 2, %s24
        %s253 = smul.u32 2, %s24
        %v255 = vld [vmem:[%s1] sm:$0xf]
        %v256 = vld [vmem:[%s1 + $0x4] sm:$0xf]
        %v257 = vld [vmem:[%s1 + $0x8] sm:$0xf]
        %v258 = vld [vmem:[%s1 + $0xc] sm:$0xf]
        %v259 = vld [vmem:[%s1 + $0x10] sm:$0xf]
        %v260 = vld [vmem:[%s1 + $0x14] sm:$0xf]
        %v261 = vld [vmem:[%s1 + $0x18] sm:$0xf]
        %v262 = vld [vmem:[%s1 + $0x1c] sm:$0xf]
        %v263 = vld [vmem:[%s1 + $0x20] sm:$0xf]
        %v264 = vld [vmem:[%s1 + $0x24] sm:$0xf]
        %v265 = vld [vmem:[%s1 + $0x28] sm:$0xf]
        %v266 = vld [vmem:[%s1 + $0x2c] sm:$0xf]
        %v267 = vld [vmem:[%s3] sm:$0x3]
        %v268 = vld [vmem:[%s2] sm:$0xff]
        %v269 = vld [vmem:[%s2 + $0x8] sm:$0xff]
        %v270 = vld [vmem:[%s2 + $0x10] sm:$0xff]
        %v271 = vld [vmem:[%s2 + $0x18] sm:$0xff]
        %v272 = vld [vmem:[%s2 + $0x20] sm:$0xff]
        %v273 = vld [vmem:[%s2 + $0x28] sm:$0xff]
        %v274 = vld [vmem:[%s2 + $0x30] sm:$0xff]
        %v275 = vld [vmem:[%s2 + $0x38] sm:$0xff]
        %v276 = vld [vmem:[%s2 + $0x40] sm:$0xff]
        %v277 = vld [vmem:[%s2 + $0x48] sm:$0xff]
        %v278 = vld [vmem:[%s2 + $0x50] sm:$0xff]
        %v279 = vld [vmem:[%s2 + $0x58] sm:$0xff]
        %281 = vset.pattern.permute.xlu0 0
        %282 = vperm.xlu0 %281, %v268
        %v283 = vpop.permute.xlu0 %282
        %286 = vset.pattern.permute.xlu0 0
        %287 = vperm.xlu0 %286, %v269
        %v288 = vpop.permute.xlu0 %287
        %291 = vset.pattern.permute.xlu0 0
        %292 = vperm.xlu0 %291, %v270
        %v293 = vpop.permute.xlu0 %292
        %296 = vset.pattern.permute.xlu0 0
        %297 = vperm.xlu0 %296, %v271
        %v298 = vpop.permute.xlu0 %297
        %301 = vset.pattern.permute.xlu0 0
        %302 = vperm.xlu0 %301, %v272
        %v303 = vpop.permute.xlu0 %302
        %306 = vset.pattern.permute.xlu0 0
        %307 = vperm.xlu0 %306, %v273
        %v308 = vpop.permute.xlu0 %307
        %311 = vset.pattern.permute.xlu0 0
        %312 = vperm.xlu0 %311, %v274
        %v313 = vpop.permute.xlu0 %312
        %316 = vset.pattern.permute.xlu0 0
        %317 = vperm.xlu0 %316, %v275
        %v318 = vpop.permute.xlu0 %317
        %321 = vset.pattern.permute.xlu0 0
        %322 = vperm.xlu0 %321, %v276
        %v323 = vpop.permute.xlu0 %322
        %326 = vset.pattern.permute.xlu0 0
        %327 = vperm.xlu0 %326, %v277
        %v328 = vpop.permute.xlu0 %327
        %331 = vset.pattern.permute.xlu0 0
        %332 = vperm.xlu0 %331, %v278
        %v333 = vpop.permute.xlu0 %332
        %336 = vset.pattern.permute.xlu0 0
        %337 = vperm.xlu0 %336, %v279
        %v338 = vpop.permute.xlu0 %337
        %v340 = vld [vmem:[%s4] sm:$0xf]
        %342 = vset.pattern.permute.xlu0 0
        %343 = vperm.xlu0 %342, %v340
        %v344 = vpop.permute.xlu0 %343
        %v346 = vld [vmem:[%s251] sm:$0xff]
        %v348 = vcombine.high %v346, %v346
        %v350 = vpack.c.bf16 %v346, %v346
        %v351 = vpack.c.bf16 %v348, %v348
        %v364 = vunpack.c.l.b16 %v255
        %v365 = vunpack.c.l.b16 %v256
        %v366 = vunpack.c.l.b16 %v257
        %v367 = vunpack.c.l.b16 %v258
        %v368 = vunpack.c.l.b16 %v259
        %v369 = vunpack.c.l.b16 %v260
        %v370 = vunpack.c.l.b16 %v261
        %v371 = vunpack.c.l.b16 %v262
        %v372 = vunpack.c.l.b16 %v263
        %v373 = vunpack.c.l.b16 %v264
        %v374 = vunpack.c.l.b16 %v265
        %v375 = vunpack.c.l.b16 %v266
        %v376 = vpack.c.b16 %v365, %v364
        %v377 = vpack.c.b16 %v367, %v366
        %v378 = vpack.c.b16 %v369, %v368
        %v379 = vpack.c.b16 %v371, %v370
        %v380 = vpack.c.b16 %v373, %v372
        %v381 = vpack.c.b16 %v375, %v374
        %vm382 = vcmask 31744
        %v384 = vsel %vm382, %v376, 0
        %v387 = vsel %vm382, %v377, 0
        %v390 = vsel %vm382, %v378, 0
        %v393 = vsel %vm382, %v379, 0
        %v396 = vsel %vm382, %v380, 0
        %v399 = vsel %vm382, %v381, 0
        %vm401 = vcmask 1041408
        %v403 = vsel %vm401, %v350, 0
        %v406 = vsel %vm401, %v351, 0
        %408 = vmatprep.subr.bf16.mxu0 %v406
        %409 = vmatpush1.bf16.msra.mxu0 %v403
        %410 = vmatprep.subr.bf16.mxu0 0
        %411 = vmatpush1.bf16.msra.mxu0 0
        %412 = vmatprep.subr.bf16.mxu0 0
        %413 = vmatpush1.bf16.msra.mxu0 0
        %414 = vmatprep.subr.bf16.mxu0 0
        %415 = vmatpush1.bf16.msra.mxu0 0
        %416 = vmatprep.subr.bf16.mxu0 0
        %417 = vmatpush1.bf16.msra.mxu0 0
        %418 = vmatprep.subr.bf16.mxu0 0
        %419 = vmatpush1.bf16.msra.mxu0 0
        %420 = vmatprep.subr.bf16.mxu0 0
        %421 = vmatpush1.bf16.msra.mxu0 0
        %422 = vmatprep.subr.bf16.mxu0 0
        %423 = vmatpush1.bf16.msra.mxu0 0
        %424 = vmatprep.subr.bf16.mxu0 0
        %425 = vmatpush1.bf16.msra.mxu0 0
        %426 = vmatprep.subr.bf16.mxu0 0
        %427 = vmatpush1.bf16.msra.mxu0 0
        %428 = vmatprep.subr.bf16.mxu0 0
        %429 = vmatpush1.bf16.msra.mxu0 0
        %430 = vmatprep.subr.bf16.mxu0 0
        %431 = vmatpush1.bf16.msra.mxu0 0
        %432 = vmatprep.subr.bf16.mxu0 0
        %433 = vmatpush1.bf16.msra.mxu0 0
        %434 = vmatprep.subr.bf16.mxu0 0
        %435 = vmatpush1.bf16.msra.mxu0 0
        %436 = vmatprep.subr.bf16.mxu0 0
        %437 = vmatpush1.bf16.msra.mxu0 0
        %438 = vmatprep.subr.bf16.mxu0 0
        %439 = vmatpush1.bf16.msra.mxu0 0
        %440 = vmatprep.mubr.bf16.mxu0 0
        %441 = vmatmul.mubr.bf16.gmra.mrb[0].mxu0 %v384
        %v442 = vpop.f32.mrb[0].mxu0
        %v443 = vadd.f32 %v283, %v442
        %v444 = vpop.f32.mrb[0].mxu0
        %v445 = vadd.f32 %v283, %v444
        %v446 = vpop.f32.mrb[0].mxu0
        %v447 = vadd.f32 %v288, %v446
        %v448 = vpop.f32.mrb[0].mxu0
        %v449 = vadd.f32 %v288, %v448
        %450 = vmatprep.mubr.bf16.mxu0 0
        %451 = vmatmul.mubr.bf16.gmra.mrb[0].mxu0 %v387
        %v452 = vpop.f32.mrb[0].mxu0
        %v453 = vadd.f32 %v293, %v452
        %v454 = vpop.f32.mrb[0].mxu0
        %v455 = vadd.f32 %v293, %v454
        %v456 = vpop.f32.mrb[0].mxu0
        %v457 = vadd.f32 %v298, %v456
        %v458 = vpop.f32.mrb[0].mxu0
        %v459 = vadd.f32 %v298, %v458
        %460 = vmatprep.mubr.bf16.mxu0 0
        %461 = vmatmul.mubr.bf16.gmra.mrb[0].mxu0 %v390
        %v462 = vpop.f32.mrb[0].mxu0
        %v463 = vadd.f32 %v303, %v462
        %v464 = vpop.f32.mrb[0].mxu0
        %v465 = vadd.f32 %v303, %v464
        %v466 = vpop.f32.mrb[0].mxu0
        %v467 = vadd.f32 %v308, %v466
        %v468 = vpop.f32.mrb[0].mxu0
        %v469 = vadd.f32 %v308, %v468
        %470 = vmatprep.mubr.bf16.mxu0 0
        %471 = vmatmul.mubr.bf16.gmra.mrb[0].mxu0 %v393
        %v472 = vpop.f32.mrb[0].mxu0
        %v473 = vadd.f32 %v313, %v472
        %v474 = vpop.f32.mrb[0].mxu0
        %v475 = vadd.f32 %v313, %v474
        %v476 = vpop.f32.mrb[0].mxu0
        %v477 = vadd.f32 %v318, %v476
        %v478 = vpop.f32.mrb[0].mxu0
        %v479 = vadd.f32 %v318, %v478
        %480 = vmatprep.mubr.bf16.mxu0 0
        %481 = vmatmul.mubr.bf16.gmra.mrb[0].mxu0 %v396
        %v482 = vpop.f32.mrb[0].mxu0
        %v483 = vadd.f32 %v323, %v482
        %v484 = vpop.f32.mrb[0].mxu0
        %v485 = vadd.f32 %v323, %v484
        %v486 = vpop.f32.mrb[0].mxu0
        %v487 = vadd.f32 %v328, %v486
        %v488 = vpop.f32.mrb[0].mxu0
        %v489 = vadd.f32 %v328, %v488
        %490 = vmatprep.mubr.bf16.mxu0 0
        %491 = vmatmul.mubr.bf16.gmra.mrb[0].mxu0 %v399
        %v492 = vpop.f32.mrb[0].mxu0
        %v493 = vadd.f32 %v333, %v492
        %v494 = vpop.f32.mrb[0].mxu0
        %v495 = vadd.f32 %v333, %v494
        %v496 = vpop.f32.mrb[0].mxu0
        %v497 = vadd.f32 %v338, %v496
        %v498 = vpop.f32.mrb[0].mxu0
        %v499 = vadd.f32 %v338, %v498
        %500 = vdwg.mxu0
        %v501 = vmax.f32 %v443, 0.0
        %v502 = vmax.f32 %v445, 0.0
        %v503 = vmax.f32 %v447, 0.0
        %v504 = vmax.f32 %v449, 0.0
        %v505 = vmax.f32 %v453, 0.0
        %v506 = vmax.f32 %v455, 0.0
        %v507 = vmax.f32 %v457, 0.0
        %v508 = vmax.f32 %v459, 0.0
        %v509 = vmax.f32 %v463, 0.0
        %v510 = vmax.f32 %v465, 0.0
        %v511 = vmax.f32 %v467, 0.0
        %v512 = vmax.f32 %v469, 0.0
        %v513 = vmax.f32 %v473, 0.0
        %v514 = vmax.f32 %v475, 0.0
        %v515 = vmax.f32 %v477, 0.0
        %v516 = vmax.f32 %v479, 0.0
        %v517 = vmax.f32 %v483, 0.0
        %v518 = vmax.f32 %v485, 0.0
        %v519 = vmax.f32 %v487, 0.0
        %v520 = vmax.f32 %v489, 0.0
        %v521 = vmax.f32 %v493, 0.0
        %v522 = vmax.f32 %v495, 0.0
        %v523 = vmax.f32 %v497, 0.0
        %v524 = vmax.f32 %v499, 0.0
        %vm525 = vcmp.ne.f32.partialorder %v443, %v443
        %vm526 = vcmp.ne.f32.partialorder %v445, %v445
        %vm527 = vcmp.ne.f32.partialorder %v447, %v447
        %vm528 = vcmp.ne.f32.partialorder %v449, %v449
        %vm529 = vcmp.ne.f32.partialorder %v453, %v453
        %vm530 = vcmp.ne.f32.partialorder %v455, %v455
        %vm531 = vcmp.ne.f32.partialorder %v457, %v457
        %vm532 = vcmp.ne.f32.partialorder %v459, %v459
        %vm533 = vcmp.ne.f32.partialorder %v463, %v463
        %vm534 = vcmp.ne.f32.partialorder %v465, %v465
        %vm535 = vcmp.ne.f32.partialorder %v467, %v467
        %vm536 = vcmp.ne.f32.partialorder %v469, %v469
        %vm537 = vcmp.ne.f32.partialorder %v473, %v473
        %vm538 = vcmp.ne.f32.partialorder %v475, %v475
        %vm539 = vcmp.ne.f32.partialorder %v477, %v477
        %vm540 = vcmp.ne.f32.partialorder %v479, %v479
        %vm541 = vcmp.ne.f32.partialorder %v483, %v483
        %vm542 = vcmp.ne.f32.partialorder %v485, %v485
        %vm543 = vcmp.ne.f32.partialorder %v487, %v487
        %vm544 = vcmp.ne.f32.partialorder %v489, %v489
        %vm545 = vcmp.ne.f32.partialorder %v493, %v493
        %vm546 = vcmp.ne.f32.partialorder %v495, %v495
        %vm547 = vcmp.ne.f32.partialorder %v497, %v497
        %vm548 = vcmp.ne.f32.partialorder %v499, %v499
        %v549 = vadd.f32 %v443, 0.0
        %v550 = vadd.f32 %v445, 0.0
        %v551 = vadd.f32 %v447, 0.0
        %v552 = vadd.f32 %v449, 0.0
        %v553 = vadd.f32 %v453, 0.0
        %v554 = vadd.f32 %v455, 0.0
        %v555 = vadd.f32 %v457, 0.0
        %v556 = vadd.f32 %v459, 0.0
        %v557 = vadd.f32 %v463, 0.0
        %v558 = vadd.f32 %v465, 0.0
        %v559 = vadd.f32 %v467, 0.0
        %v560 = vadd.f32 %v469, 0.0
        %v561 = vadd.f32 %v473, 0.0
        %v562 = vadd.f32 %v475, 0.0
        %v563 = vadd.f32 %v477, 0.0
        %v564 = vadd.f32 %v479, 0.0
        %v565 = vadd.f32 %v483, 0.0
        %v566 = vadd.f32 %v485, 0.0
        %v567 = vadd.f32 %v487, 0.0
        %v568 = vadd.f32 %v489, 0.0
        %v569 = vadd.f32 %v493, 0.0
        %v570 = vadd.f32 %v495, 0.0
        %v571 = vadd.f32 %v497, 0.0
        %v572 = vadd.f32 %v499, 0.0
        %v573 = vand.u32 2147483647, %v443
        %v574 = vand.u32 2147483647, %v445
        %v575 = vand.u32 2147483647, %v447
        %v576 = vand.u32 2147483647, %v449
        %v577 = vand.u32 2147483647, %v453
        %v578 = vand.u32 2147483647, %v455
        %v579 = vand.u32 2147483647, %v457
        %v580 = vand.u32 2147483647, %v459
        %v581 = vand.u32 2147483647, %v463
        %v582 = vand.u32 2147483647, %v465
        %v583 = vand.u32 2147483647, %v467
        %v584 = vand.u32 2147483647, %v469
        %v585 = vand.u32 2147483647, %v473
        %v586 = vand.u32 2147483647, %v475
        %v587 = vand.u32 2147483647, %v477
        %v588 = vand.u32 2147483647, %v479
        %v589 = vand.u32 2147483647, %v483
        %v590 = vand.u32 2147483647, %v485
        %v591 = vand.u32 2147483647, %v487
        %v592 = vand.u32 2147483647, %v489
        %v593 = vand.u32 2147483647, %v493
        %v594 = vand.u32 2147483647, %v495
        %v595 = vand.u32 2147483647, %v497
        %v596 = vand.u32 2147483647, %v499
        %v597 = vsub.f32 0.0, %v573
        %v598 = vsub.f32 0.0, %v574
        %v599 = vsub.f32 0.0, %v575
        %v600 = vsub.f32 0.0, %v576
        %v601 = vsub.f32 0.0, %v577
        %v602 = vsub.f32 0.0, %v578
        %v603 = vsub.f32 0.0, %v579
        %v604 = vsub.f32 0.0, %v580
        %v605 = vsub.f32 0.0, %v581
        %v606 = vsub.f32 0.0, %v582
        %v607 = vsub.f32 0.0, %v583
        %v608 = vsub.f32 0.0, %v584
        %v609 = vsub.f32 0.0, %v585
        %v610 = vsub.f32 0.0, %v586
        %v611 = vsub.f32 0.0, %v587
        %v612 = vsub.f32 0.0, %v588
        %v613 = vsub.f32 0.0, %v589
        %v614 = vsub.f32 0.0, %v590
        %v615 = vsub.f32 0.0, %v591
        %v616 = vsub.f32 0.0, %v592
        %v617 = vsub.f32 0.0, %v593
        %v618 = vsub.f32 0.0, %v594
        %v619 = vsub.f32 0.0, %v595
        %v620 = vsub.f32 0.0, %v596
        %v621 = vmul.f32 %v597, 1.442695
        %v622 = vpow.pop %v621
        %v623 = vmul.f32 %v598, 1.442695
        %v624 = vpow.pop %v623
        %v625 = vmul.f32 %v599, 1.442695
        %v626 = vpow.pop %v625
        %v627 = vmul.f32 %v600, 1.442695
        %v628 = vpow.pop %v627
        %v629 = vmul.f32 %v601, 1.442695
        %v630 = vpow.pop %v629
        %v631 = vmul.f32 %v602, 1.442695
        %v632 = vpow.pop %v631
        %v633 = vmul.f32 %v603, 1.442695
        %v634 = vpow.pop %v633
        %v635 = vmul.f32 %v604, 1.442695
        %v636 = vpow.pop %v635
        %v637 = vmul.f32 %v605, 1.442695
        %v638 = vpow.pop %v637
        %v639 = vmul.f32 %v606, 1.442695
        %v640 = vpow.pop %v639
        %v641 = vmul.f32 %v607, 1.442695
        %v642 = vpow.pop %v641
        %v643 = vmul.f32 %v608, 1.442695
        %v644 = vpow.pop %v643
        %v645 = vmul.f32 %v609, 1.442695
        %v646 = vpow.pop %v645
        %v647 = vmul.f32 %v610, 1.442695
        %v648 = vpow.pop %v647
        %v649 = vmul.f32 %v611, 1.442695
        %v650 = vpow.pop %v649
        %v651 = vmul.f32 %v612, 1.442695
        %v652 = vpow.pop %v651
        %v653 = vmul.f32 %v613, 1.442695
        %v654 = vpow.pop %v653
        %v655 = vmul.f32 %v614, 1.442695
        %v656 = vpow.pop %v655
        %v657 = vmul.f32 %v615, 1.442695
        %v658 = vpow.pop %v657
        %v659 = vmul.f32 %v616, 1.442695
        %v660 = vpow.pop %v659
        %v661 = vmul.f32 %v617, 1.442695
        %v662 = vpow.pop %v661
        %v663 = vmul.f32 %v618, 1.442695
        %v664 = vpow.pop %v663
        %v665 = vmul.f32 %v619, 1.442695
        %v666 = vpow.pop %v665
        %v667 = vmul.f32 %v620, 1.442695
        %v668 = vpow.pop %v667
        %v669 = vadd.f32 %v622, 1.0
        %v670 = vlog2.pop %v669
        %v671 = vmul.f32 %v670, 0.6931472
        %v672 = vmul.f32 -0.5, %v622
        %v673 = vadd.f32 %v672, 1.0
        %v674 = vmul.f32 %v673, %v622
        %v675 = vand.u32 2147483647, %v622
        %vm676 = vcmp.lt.f32.partialorder %v675, 0.0004427343
        %v677 = vsel %vm676, %v674, %v671
        %v678 = vadd.f32 %v624, 1.0
        %v679 = vlog2.pop %v678
        %v680 = vmul.f32 %v679, 0.6931472
        %v681 = vmul.f32 -0.5, %v624
        %v682 = vadd.f32 %v681, 1.0
        %v683 = vmul.f32 %v682, %v624
        %v684 = vand.u32 2147483647, %v624
        %vm685 = vcmp.lt.f32.partialorder %v684, 0.0004427343
        %v686 = vsel %vm685, %v683, %v680
        %v687 = vadd.f32 %v626, 1.0
        %v688 = vlog2.pop %v687
        %v689 = vmul.f32 %v688, 0.6931472
        %v690 = vmul.f32 -0.5, %v626
        %v691 = vadd.f32 %v690, 1.0
        %v692 = vmul.f32 %v691, %v626
        %v693 = vand.u32 2147483647, %v626
        %vm694 = vcmp.lt.f32.partialorder %v693, 0.0004427343
        %v695 = vsel %vm694, %v692, %v689
        %v696 = vadd.f32 %v628, 1.0
        %v697 = vlog2.pop %v696
        %v698 = vmul.f32 %v697, 0.6931472
        %v699 = vmul.f32 -0.5, %v628
        %v700 = vadd.f32 %v699, 1.0
        %v701 = vmul.f32 %v700, %v628
        %v702 = vand.u32 2147483647, %v628
        %vm703 = vcmp.lt.f32.partialorder %v702, 0.0004427343
        %v704 = vsel %vm703, %v701, %v698
        %v705 = vadd.f32 %v630, 1.0
        %v706 = vlog2.pop %v705
        %v707 = vmul.f32 %v706, 0.6931472
        %v708 = vmul.f32 -0.5, %v630
        %v709 = vadd.f32 %v708, 1.0
        %v710 = vmul.f32 %v709, %v630
        %v711 = vand.u32 2147483647, %v630
        %vm712 = vcmp.lt.f32.partialorder %v711, 0.0004427343
        %v713 = vsel %vm712, %v710, %v707
        %v714 = vadd.f32 %v632, 1.0
        %v715 = vlog2.pop %v714
        %v716 = vmul.f32 %v715, 0.6931472
        %v717 = vmul.f32 -0.5, %v632
        %v718 = vadd.f32 %v717, 1.0
        %v719 = vmul.f32 %v718, %v632
        %v720 = vand.u32 2147483647, %v632
        %vm721 = vcmp.lt.f32.partialorder %v720, 0.0004427343
        %v722 = vsel %vm721, %v719, %v716
        %v723 = vadd.f32 %v634, 1.0
        %v724 = vlog2.pop %v723
        %v725 = vmul.f32 %v724, 0.6931472
        %v726 = vmul.f32 -0.5, %v634
        %v727 = vadd.f32 %v726, 1.0
        %v728 = vmul.f32 %v727, %v634
        %v729 = vand.u32 2147483647, %v634
        %vm730 = vcmp.lt.f32.partialorder %v729, 0.0004427343
        %v731 = vsel %vm730, %v728, %v725
        %v732 = vadd.f32 %v636, 1.0
        %v733 = vlog2.pop %v732
        %v734 = vmul.f32 %v733, 0.6931472
        %v735 = vmul.f32 -0.5, %v636
        %v736 = vadd.f32 %v735, 1.0
        %v737 = vmul.f32 %v736, %v636
        %v738 = vand.u32 2147483647, %v636
        %vm739 = vcmp.lt.f32.partialorder %v738, 0.0004427343
        %v740 = vsel %vm739, %v737, %v734
        %v741 = vadd.f32 %v638, 1.0
        %v742 = vlog2.pop %v741
        %v743 = vmul.f32 %v742, 0.6931472
        %v744 = vmul.f32 -0.5, %v638
        %v745 = vadd.f32 %v744, 1.0
        %v746 = vmul.f32 %v745, %v638
        %v747 = vand.u32 2147483647, %v638
        %vm748 = vcmp.lt.f32.partialorder %v747, 0.0004427343
        %v749 = vsel %vm748, %v746, %v743
        %v750 = vadd.f32 %v640, 1.0
        %v751 = vlog2.pop %v750
        %v752 = vmul.f32 %v751, 0.6931472
        %v753 = vmul.f32 -0.5, %v640
        %v754 = vadd.f32 %v753, 1.0
        %v755 = vmul.f32 %v754, %v640
        %v756 = vand.u32 2147483647, %v640
        %vm757 = vcmp.lt.f32.partialorder %v756, 0.0004427343
        %v758 = vsel %vm757, %v755, %v752
        %v759 = vadd.f32 %v642, 1.0
        %v760 = vlog2.pop %v759
        %v761 = vmul.f32 %v760, 0.6931472
        %v762 = vmul.f32 -0.5, %v642
        %v763 = vadd.f32 %v762, 1.0
        %v764 = vmul.f32 %v763, %v642
        %v765 = vand.u32 2147483647, %v642
        %vm766 = vcmp.lt.f32.partialorder %v765, 0.0004427343
        %v767 = vsel %vm766, %v764, %v761
        %v768 = vadd.f32 %v644, 1.0
        %v769 = vlog2.pop %v768
        %v770 = vmul.f32 %v769, 0.6931472
        %v771 = vmul.f32 -0.5, %v644
        %v772 = vadd.f32 %v771, 1.0
        %v773 = vmul.f32 %v772, %v644
        %v774 = vand.u32 2147483647, %v644
        %vm775 = vcmp.lt.f32.partialorder %v774, 0.0004427343
        %v776 = vsel %vm775, %v773, %v770
        %v777 = vadd.f32 %v646, 1.0
        %v778 = vlog2.pop %v777
        %v779 = vmul.f32 %v778, 0.6931472
        %v780 = vmul.f32 -0.5, %v646
        %v781 = vadd.f32 %v780, 1.0
        %v782 = vmul.f32 %v781, %v646
        %v783 = vand.u32 2147483647, %v646
        %vm784 = vcmp.lt.f32.partialorder %v783, 0.0004427343
        %v785 = vsel %vm784, %v782, %v779
        %v786 = vadd.f32 %v648, 1.0
        %v787 = vlog2.pop %v786
        %v788 = vmul.f32 %v787, 0.6931472
        %v789 = vmul.f32 -0.5, %v648
        %v790 = vadd.f32 %v789, 1.0
        %v791 = vmul.f32 %v790, %v648
        %v792 = vand.u32 2147483647, %v648
        %vm793 = vcmp.lt.f32.partialorder %v792, 0.0004427343
        %v794 = vsel %vm793, %v791, %v788
        %v795 = vadd.f32 %v650, 1.0
        %v796 = vlog2.pop %v795
        %v797 = vmul.f32 %v796, 0.6931472
        %v798 = vmul.f32 -0.5, %v650
        %v799 = vadd.f32 %v798, 1.0
        %v800 = vmul.f32 %v799, %v650
        %v801 = vand.u32 2147483647, %v650
        %vm802 = vcmp.lt.f32.partialorder %v801, 0.0004427343
        %v803 = vsel %vm802, %v800, %v797
        %v804 = vadd.f32 %v652, 1.0
        %v805 = vlog2.pop %v804
        %v806 = vmul.f32 %v805, 0.6931472
        %v807 = vmul.f32 -0.5, %v652
        %v808 = vadd.f32 %v807, 1.0
        %v809 = vmul.f32 %v808, %v652
        %v810 = vand.u32 2147483647, %v652
        %vm811 = vcmp.lt.f32.partialorder %v810, 0.0004427343
        %v812 = vsel %vm811, %v809, %v806
        %v813 = vadd.f32 %v654, 1.0
        %v814 = vlog2.pop %v813
        %v815 = vmul.f32 %v814, 0.6931472
        %v816 = vmul.f32 -0.5, %v654
        %v817 = vadd.f32 %v816, 1.0
        %v818 = vmul.f32 %v817, %v654
        %v819 = vand.u32 2147483647, %v654
        %vm820 = vcmp.lt.f32.partialorder %v819, 0.0004427343
        %v821 = vsel %vm820, %v818, %v815
        %v822 = vadd.f32 %v656, 1.0
        %v823 = vlog2.pop %v822
        %v824 = vmul.f32 %v823, 0.6931472
        %v825 = vmul.f32 -0.5, %v656
        %v826 = vadd.f32 %v825, 1.0
        %v827 = vmul.f32 %v826, %v656
        %v828 = vand.u32 2147483647, %v656
        %vm829 = vcmp.lt.f32.partialorder %v828, 0.0004427343
        %v830 = vsel %vm829, %v827, %v824
        %v831 = vadd.f32 %v658, 1.0
        %v832 = vlog2.pop %v831
        %v833 = vmul.f32 %v832, 0.6931472
        %v834 = vmul.f32 -0.5, %v658
        %v835 = vadd.f32 %v834, 1.0
        %v836 = vmul.f32 %v835, %v658
        %v837 = vand.u32 2147483647, %v658
        %vm838 = vcmp.lt.f32.partialorder %v837, 0.0004427343
        %v839 = vsel %vm838, %v836, %v833
        %v840 = vadd.f32 %v660, 1.0
        %v841 = vlog2.pop %v840
        %v842 = vmul.f32 %v841, 0.6931472
        %v843 = vmul.f32 -0.5, %v660
        %v844 = vadd.f32 %v843, 1.0
        %v845 = vmul.f32 %v844, %v660
        %v846 = vand.u32 2147483647, %v660
        %vm847 = vcmp.lt.f32.partialorder %v846, 0.0004427343
        %v848 = vsel %vm847, %v845, %v842
        %v849 = vadd.f32 %v662, 1.0
        %v850 = vlog2.pop %v849
        %v851 = vmul.f32 %v850, 0.6931472
        %v852 = vmul.f32 -0.5, %v662
        %v853 = vadd.f32 %v852, 1.0
        %v854 = vmul.f32 %v853, %v662
        %v855 = vand.u32 2147483647, %v662
        %vm856 = vcmp.lt.f32.partialorder %v855, 0.0004427343
        %v857 = vsel %vm856, %v854, %v851
        %v858 = vadd.f32 %v664, 1.0
        %v859 = vlog2.pop %v858
        %v860 = vmul.f32 %v859, 0.6931472
        %v861 = vmul.f32 -0.5, %v664
        %v862 = vadd.f32 %v861, 1.0
        %v863 = vmul.f32 %v862, %v664
        %v864 = vand.u32 2147483647, %v664
        %vm865 = vcmp.lt.f32.partialorder %v864, 0.0004427343
        %v866 = vsel %vm865, %v863, %v860
        %v867 = vadd.f32 %v666, 1.0
        %v868 = vlog2.pop %v867
        %v869 = vmul.f32 %v868, 0.6931472
        %v870 = vmul.f32 -0.5, %v666
        %v871 = vadd.f32 %v870, 1.0
        %v872 = vmul.f32 %v871, %v666
        %v873 = vand.u32 2147483647, %v666
        %vm874 = vcmp.lt.f32.partialorder %v873, 0.0004427343
        %v875 = vsel %vm874, %v872, %v869
        %v876 = vadd.f32 %v668, 1.0
        %v877 = vlog2.pop %v876
        %v878 = vmul.f32 %v877, 0.6931472
        %v879 = vmul.f32 -0.5, %v668
        %v880 = vadd.f32 %v879, 1.0
        %v881 = vmul.f32 %v880, %v668
        %v882 = vand.u32 2147483647, %v668
        %vm883 = vcmp.lt.f32.partialorder %v882, 0.0004427343
        %v884 = vsel %vm883, %v881, %v878
        %v885 = vadd.f32 %v501, %v677
        %v886 = vadd.f32 %v502, %v686
        %v887 = vadd.f32 %v503, %v695
        %v888 = vadd.f32 %v504, %v704
        %v889 = vadd.f32 %v505, %v713
        %v890 = vadd.f32 %v506, %v722
        %v891 = vadd.f32 %v507, %v731
        %v892 = vadd.f32 %v508, %v740
        %v893 = vadd.f32 %v509, %v749
        %v894 = vadd.f32 %v510, %v758
        %v895 = vadd.f32 %v511, %v767
        %v896 = vadd.f32 %v512, %v776
        %v897 = vadd.f32 %v513, %v785
        %v898 = vadd.f32 %v514, %v794
        %v899 = vadd.f32 %v515, %v803
        %v900 = vadd.f32 %v516, %v812
        %v901 = vadd.f32 %v517, %v821
        %v902 = vadd.f32 %v518, %v830
        %v903 = vadd.f32 %v519, %v839
        %v904 = vadd.f32 %v520, %v848
        %v905 = vadd.f32 %v521, %v857
        %v906 = vadd.f32 %v522, %v866
        %v907 = vadd.f32 %v523, %v875
        %v908 = vadd.f32 %v524, %v884
        %v909 = vsel %vm525, %v549, %v885
        %v910 = vsel %vm526, %v550, %v886
        %v911 = vsel %vm527, %v551, %v887
        %v912 = vsel %vm528, %v552, %v888
        %v913 = vsel %vm529, %v553, %v889
        %v914 = vsel %vm530, %v554, %v890
        %v915 = vsel %vm531, %v555, %v891
        %v916 = vsel %vm532, %v556, %v892
        %v917 = vsel %vm533, %v557, %v893
        %v918 = vsel %vm534, %v558, %v894
        %v919 = vsel %vm535, %v559, %v895
        %v920 = vsel %vm536, %v560, %v896
        %v921 = vsel %vm537, %v561, %v897
        %v922 = vsel %vm538, %v562, %v898
        %v923 = vsel %vm539, %v563, %v899
        %v924 = vsel %vm540, %v564, %v900
        %v925 = vsel %vm541, %v565, %v901
        %v926 = vsel %vm542, %v566, %v902
        %v927 = vsel %vm543, %v567, %v903
        %v928 = vsel %vm544, %v568, %v904
        %v929 = vsel %vm545, %v569, %v905
        %v930 = vsel %vm546, %v570, %v906
        %v931 = vsel %vm547, %v571, %v907
        %v932 = vsel %vm548, %v572, %v908
        %v933 = vpack.c.bf16 %v911, %v909
        %v934 = vpack.c.bf16 %v912, %v910
        %v935 = vpack.c.bf16 %v915, %v913
        %v936 = vpack.c.bf16 %v916, %v914
        %v937 = vpack.c.bf16 %v919, %v917
        %v938 = vpack.c.bf16 %v920, %v918
        %v939 = vpack.c.bf16 %v923, %v921
        %v940 = vpack.c.bf16 %v924, %v922
        %v941 = vpack.c.bf16 %v927, %v925
        %v942 = vpack.c.bf16 %v928, %v926
        %v943 = vpack.c.bf16 %v931, %v929
        %v944 = vpack.c.bf16 %v932, %v930
        %vm945 = vcmask 785408
        %v947 = vsel %vm945, %v267, 0
        %949 = vmatprep.subr.bf16.mxu0 %v934
        %950 = vmatpush1.bf16.msra.mxu0 %v933
        %951 = vmatprep.subr.bf16.mxu0 %v936
        %952 = vmatpush1.bf16.msra.mxu0 %v935
        %953 = vmatprep.subr.bf16.mxu0 %v938
        %954 = vmatpush1.bf16.msra.mxu0 %v937
        %955 = vmatprep.subr.bf16.mxu0 %v940
        %956 = vmatpush1.bf16.msra.mxu0 %v939
        %957 = vmatprep.subr.bf16.mxu0 %v942
        %958 = vmatpush1.bf16.msra.mxu0 %v941
        %959 = vmatprep.subr.bf16.mxu0 %v944
        %960 = vmatpush1.bf16.msra.mxu0 %v943
        %961 = vmatprep.subr.bf16.mxu0 0
        %962 = vmatpush1.bf16.msra.mxu0 0
        %963 = vmatprep.subr.bf16.mxu0 0
        %964 = vmatpush1.bf16.msra.mxu0 0
        %965 = vmatprep.subr.bf16.mxu0 0
        %966 = vmatpush1.bf16.msra.mxu0 0
        %967 = vmatprep.subr.bf16.mxu0 0
        %968 = vmatpush1.bf16.msra.mxu0 0
        %969 = vmatprep.subr.bf16.mxu0 0
        %970 = vmatpush1.bf16.msra.mxu0 0
        %971 = vmatprep.subr.bf16.mxu0 0
        %972 = vmatpush1.bf16.msra.mxu0 0
        %973 = vmatprep.subr.bf16.mxu0 0
        %974 = vmatpush1.bf16.msra.mxu0 0
        %975 = vmatprep.subr.bf16.mxu0 0
        %976 = vmatpush1.bf16.msra.mxu0 0
        %977 = vmatprep.subr.bf16.mxu0 0
        %978 = vmatpush1.bf16.msra.mxu0 0
        %979 = vmatprep.subr.bf16.mxu0 0
        %980 = vmatpush1.bf16.msra.mxu0 0
        %981 = vmatprep.mubr.bf16.mxu0 0
        %982 = vmatmul.mubr.bf16.gmra.mrb[0].mxu0 %v947
        %v983 = vpop.f32.mrb[0].mxu0
        %v984 = vadd.f32 %v344, %v983
        %v985 = vpop.f32.mrb[0].mxu0
        %v986 = vadd.f32 %v344, %v985
        %v987 = vpop.f32.mrb[0].mxu0
        %v988 = vpop.f32.mrb[0].mxu0
        %989 = vdwg.mxu0
        %v992 = vcombine.low %v984, %v986
        %994 = vst [vmem:[%s242] sm:$0xff] %v992
        %s995 = sand.u32 %s153, 1
        %s996 = scalar_lea.sflag [#allocation3], %s995
        %s997 = sand.u32 %s153, 1
        %s998 = smul.addr %s997, 8
        %s999 = scalar_lea.vmem [#allocation2], %s998
        // Predicated region
        $region41: #{tpu_custom_call.1} parent=39 // pred_check
          %p1000 = pneg %p163
        $region42: #{tpu_custom_call.1} parent=39 // pred_check_branch
          %1002 = sbr.rel (%p1000) target = $region44
        $region43: #{tpu_custom_call.1} parent=39 // pred_region
          %s1003 = smul.u32 2, %s24
          %s1005 = ssub.s32 128, 128
          %1006 = vsyncadd %s996, %s1005
          %s1007 = smul.addr %s23, 2
          %s1008 = sadd.s32 %s1003, %s1007
          %s1009 = smul.addr %s1008, 64
          %s1010 = scalar_lea.hbm %s5, %s1009
          %s1012 = sshll.u32 %s999, 4
          %s1013 = int_to_ptr.vmem [resolvable:$true] %s1012
          %1015 = dma.vmem_to_hbm [thread:$0]  %s1013, 128, %s1010, %s996
        $region44: #{tpu_custom_call.1} parent=39 // pred_fallthru
          _
      $region40: #{tpu_custom_call.1} parent=5 // pred_fallthru
        _
      %p1016 = scmp.le.s32.totalorder 2, %s14
      // Predicated region
      $region45: #{tpu_custom_call.1} parent=5 // pred_check
        %p1017 = pneg %p1016
      $region46: #{tpu_custom_call.1} parent=5 // pred_check_branch
        %1019 = sbr.rel (%p1017) target = $region48
      $region47: #{tpu_custom_call.1} parent=5 // pred_region
        %s1020 = ssub.s32 %s14, 2
        // Predicated region
        $region49: #{tpu_custom_call.1} parent=47 // pred_check
          %p1021 = pneg %p169
        $region50: #{tpu_custom_call.1} parent=47 // pred_check_branch
          %1023 = sbr.rel (%p1021) target = $region52
        $region51: #{tpu_custom_call.1} parent=47 // pred_region
          %s1024 = sand.u32 %s154, 1
          %s1025 = scalar_lea.sflag [#allocation3], %s1024
          %s1026 = sand.u32 %s154, 1
          %s1027 = smul.addr %s1026, 8
          %s1028 = scalar_lea.vmem [#allocation2], %s1027
          %1029 = dma.done %s1025, 128
        $region52: #{tpu_custom_call.1} parent=47 // pred_fallthru
          _
      $region48: #{tpu_custom_call.1} parent=5 // pred_fallthru
        _
    $region6: #{tpu_custom_call.1} parent=1 // loop_footer
      %s18 = sadd.s32 1, %s14
    $region7: #{tpu_custom_call.1} parent=1 // loop_footer_branch
      %13 = sbr.rel target = $region3
    $region8: #{tpu_custom_call.1} parent=1 // loop_exit
      _
    %1030 = vsyncpa [#allocation3], 1
    %s1031 = scalar_lea.sflag [#allocation3], 1
    %1032 = vsyncpa %s1031, 1

</llo_original>
